<compile_context>
chip_gen: v7x
topology: tpu7x:2x2x1
jax: 0.10.0
libtpu: 0.0.40
codegen_flags: <defaults>
</compile_context>

<pallas_src>
import numpy as np
import jax
import jax.numpy as jnp
from jax.experimental import pallas as pl
from jax.experimental.pallas import tpu as pltpu

S_PAD = 8                    # padded pyramid size (>= max pool size 6)
S2 = S_PAD * S_PAD           # 64 flattened (padded) pyramid cells per branch
N_BRANCH = 4
NBS2 = N_BRANCH * S2         # 256 -> lane-dense (2 full vregs wide)
POOL_SIZES = (1, 2, 3, 6)

# The module as written (modern F.upsample default) uses align_corners=False;
# the historic PSPNet / PyTorch-Encoding code effectively used True.
ALIGN_CORNERS = False


# ---------------------------------------------------------------------------
# Kernel 1: fused adaptive-average-pool (4 branches, one matmul) + 1x1 conv
# K = C reduction.  Grid = (image, channel tile); channel axis is "arbitrary".
# ---------------------------------------------------------------------------
def pool_conv_kernel(x_ref, pkT_ref, w_ref, acc_ref):
    # x_ref   : (1, CT, HW)     input channel tile, spatial flattened
    # pkT_ref : (HW, 4*S2)      4 pooling matrices kron(Ph,Pw)^T, lane-stacked
    # w_ref   : (4, OC, CT)     1x1 conv weight tile (BN folded)
    # acc_ref : (1, OC, 4*S2)   f32 output block, resident across channel axis
    c_idx = pl.program_id(1)

    @pl.when(c_idx == 0)
    def _init():
        acc_ref[...] = jnp.zeros_like(acc_ref)

    # One 256-lane-wide MXU matmul covers all four pooling branches (K = H*W).
    pooled = jnp.dot(x_ref[0], pkT_ref[...],
                     preferred_element_type=jnp.float32)            # (CT, 256)

    # Per-branch 1x1 conv partials, packed into one lane-dense 256-wide update.
    parts = []
    for k in range(N_BRANCH):                                        # static
        pk = pooled[:, k * S2:(k + 1) * S2].astype(w_ref.dtype)      # (CT, S2)
        parts.append(jnp.dot(w_ref[k], pk,
                             preferred_element_type=jnp.float32))    # (OC, S2)
    acc_ref[0] += jnp.concatenate(parts, axis=-1)                    # (OC, 256)


# ---------------------------------------------------------------------------
# Kernel 2: bias + ReLU + bilinear upsample + concat with the passthrough.
# Grid = (image, HW tile); both axes fully parallel (megacore friendly).
# ---------------------------------------------------------------------------
def upsample_concat_kernel(x_ref, acc_ref, ukT_ref, b_ref, o_ref):
    # x_ref  : (1, C, HWT)       original-dtype passthrough tile
    # acc_ref: (1, OC, 4*S2)     f32 conv accumulator from kernel 1
    # ukT_ref: (4, S2, HWT)      kron(Uh,Uw)^T upsample tiles
    # b_ref  : (1, OC, 4*S2)     folded bias, repeated over each branch block
    # o_ref  : (1, C+4*OC, HWT)  concatenated output tile (lane-dense stores)
    C = x_ref.shape[1]
    oc = acc_ref.shape[1]

    # Passthrough copy — exact, original dtype (no wrapper concat needed).
    o_ref[0, :C, :] = x_ref[0].astype(o_ref.dtype)

    # Bias + ReLU on the tiny pooled tensor, lane-dense across all branches.
    z_all = jnp.maximum(acc_ref[0] + b_ref[0], 0.0)                  # (OC, 256)

    for k in range(N_BRANCH):                                        # static
        z = z_all[:, k * S2:(k + 1) * S2].astype(ukT_ref.dtype)      # (OC, S2)
        up = jnp.dot(z, ukT_ref[k],
                     preferred_element_type=jnp.float32)             # (OC, HWT)
        o_ref[0, C + k * oc:C + (k + 1) * oc, :] = up.astype(o_ref.dtype)


# ---------------------------------------------------------------------------
# Wrapper helpers.
# ---------------------------------------------------------------------------
def _vmem_capacity_bytes():
    try:
        return int(pltpu.get_tpu_info().vmem_capacity_bytes)
    except Exception:
        return 64 * 2 ** 20          # conservative: v7x has 64 MiB / TensorCore


def _clamp_vmem(est_bytes, cap_bytes):
    return int(min(max(int(1.5 * est_bytes), 32 * 2 ** 20),
                   int(0.85 * cap_bytes)))


def _pick_channel_tile(C, max_tile=256):
    """Channel tile (multiple of 128 when tiling) and zero-padded channel count."""
    if C <= max_tile:
        return C, C
    if C % max_tile == 0:
        return max_tile, C
    for t in range(max_tile, 127, -128):
        if C % t == 0:
            return t, C
    ct = max_tile                     # pad instead of one huge fallback tile
    return ct, ((C + ct - 1) // ct) * ct


def _pick_hw_tile(HW, max_tile=512):
    if HW <= max_tile:
        return HW
    for t in range(max_tile, 127, -128):
        if HW % t == 0:
            return t
    return max_tile                   # ragged final block handled by cdiv grid


def pyramid_pooling(x, pkT_all, ukT_all, wf, bf, *, compute_dtype=None):
    """x: (N,C,H,W); pkT_all: (H*W, 4*S2); ukT_all: (4, S2, H*W);
    wf: (4, OC, C) BN-folded 1x1 conv weight; bf: (4, OC, 1) folded bias."""
    N, C, H, W = x.shape
    HW = H * W
    NB, OC, _ = wf.shape
    out_dtype = x.dtype
    cdt = out_dtype if compute_dtype is None else compute_dtype
    isz_c = jnp.dtype(cdt).itemsize
    isz_o = jnp.dtype(out_dtype).itemsize
    cap = _vmem_capacity_bytes()

    x2 = x.reshape(N, C, HW)                 # contiguous reshape, free in HBM

    # ---- kernel 1: fused pooling + conv channel reduction -------------------
    ct, C_pad = _pick_channel_tile(C)
    n_ct = C_pad // ct
    x_k1 = x2.astype(cdt)
    wf_c = wf.astype(cdt)
    if C_pad > C:                            # zero channels contribute nothing
        x_k1 = jnp.pad(x_k1, ((0, 0), (0, C_pad - C), (0, 0)))
        wf_c = jnp.pad(wf_c, ((0, 0), (0, 0), (0, C_pad - C)))
    pkT_c = pkT_all.astype(cdt)

    est1 = (2 * ct * HW * isz_c              # x tile (double-buffered)
            + 2 * HW * NBS2 * isz_c          # pooling matrices
            + 2 * NB * OC * ct * isz_c       # weight tile
            + 2 * OC * NBS2 * 4              # resident f32 output block
            + ct * NBS2 * 4                  # pooled temporary
            + 2 * OC * NBS2 * 4)             # conv partials / concat temporary

    acc = pl.pallas_call(
        pool_conv_kernel,
        out_shape=jax.ShapeDtypeStruct((N, OC, NBS2), jnp.float32),
        grid=(N, n_ct),
        in_specs=[
            pl.BlockSpec((1, ct, HW), lambda n, c: (n, c, 0)),
            pl.BlockSpec((HW, NBS2), lambda n, c: (0, 0)),
            pl.BlockSpec((NB, OC, ct), lambda n, c: (0, 0, c)),
        ],
        out_specs=pl.BlockSpec((1, OC, NBS2), lambda n, c: (n, 0, 0)),
        compiler_params=pltpu.CompilerParams(
            dimension_semantics=("parallel", "arbitrary"),
            vmem_limit_bytes=_clamp_vmem(est1, cap)),
    )(x_k1, pkT_c, wf_c)

    # ---- kernel 2: bias + ReLU + upsample + concat ---------------------------
    hwt = _pick_hw_tile(HW)
    n_hw = pl.cdiv(HW, hwt)
    ukT_c = ukT_all.astype(cdt)
    # Bias repeated across each branch's S2 block -> (1, OC, 4*S2), f32.
    b_dense = jnp.transpose(
        jnp.repeat(bf.reshape(NB, OC)[:, :, None], S2, axis=2),
        (1, 0, 2)).reshape(1, OC, NBS2).astype(jnp.float32)
    C_out = C + NB * OC

    est2 = (2 * C * hwt * isz_o              # passthrough tile
            + 2 * OC * NBS2 * 4              # accumulator
            + 2 * NB * S2 * hwt * isz_c      # upsample matrices
            + 2 * OC * NBS2 * 4              # bias
            + 2 * C_out * hwt * isz_o        # output block
            + OC * NBS2 * 4                  # z temporary
            + 2 * OC * hwt * 4)              # per-branch upsample temporary

    out2 = pl.pallas_call(
        upsample_concat_kernel,
        out_shape=jax.ShapeDtypeStruct((N, C_out, HW), out_dtype),
        grid=(N, n_hw),
        in_specs=[
            pl.BlockSpec((1, C, hwt), lambda n, h: (n, 0, h)),
            pl.BlockSpec((1, OC, NBS2), lambda n, h: (n, 0, 0)),
            pl.BlockSpec((NB, S2, hwt), lambda n, h: (0, 0, h)),
            pl.BlockSpec((1, OC, NBS2), lambda n, h: (0, 0, 0)),
        ],
        out_specs=pl.BlockSpec((1, C_out, hwt), lambda n, h: (n, 0, h)),
        compiler_params=pltpu.CompilerParams(
            dimension_semantics=("parallel", "parallel"),
            vmem_limit_bytes=_clamp_vmem(est2, cap)),
    )(x2, acc, ukT_c, b_dense)

    return out2.reshape(N, C_out, H, W)


# ---------------------------------------------------------------------------
# Host-side construction of the (tiny) pooling / upsampling matrices.
# ---------------------------------------------------------------------------
def adaptive_pool_matrix(in_size, out_size, pad_to=S_PAD):
    """PyTorch AdaptiveAvgPool2d bin semantics, rows zero-padded to pad_to."""
    P = np.zeros((pad_to, in_size), np.float32)
    for i in range(out_size):
        start = (i * in_size) // out_size
        end = -((-(i + 1) * in_size) // out_size)   # ceil
        P[i, start:end] = 1.0 / (end - start)
    return P


def bilinear_matrix(out_size, in_size, pad_to=S_PAD, align_corners=ALIGN_CORNERS):
    """F.upsample(..., mode='bilinear'), columns zero-padded to pad_to."""
    U = np.zeros((out_size, pad_to), np.float32)
    if in_size == 1:
        U[:, 0] = 1.0
        return U
    for h in range(out_size):
        if align_corners:
            src = h * (in_size - 1) / max(out_size - 1, 1)
        else:
            src = max((h + 0.5) * in_size / out_size - 0.5, 0.0)
        i0 = min(int(np.floor(src)), in_size - 1)
        i1 = min(i0 + 1, in_size - 1)
        frac = src - i0
        U[h, i0] += 1.0 - frac
        U[h, i1] += frac
    return U


def build_branch_matrices(H, W):
    ph, pw, uh, uw, pkT_cols, ukT_rows = [], [], [], [], [], []
    ii = np.repeat(np.arange(S_PAD), S_PAD)
    jj = np.tile(np.arange(S_PAD), S_PAD)
    for s in POOL_SIZES:
        Ph = adaptive_pool_matrix(H, s)          # (S_PAD, H)
        Pw = adaptive_pool_matrix(W, s)          # (S_PAD, W)
        Uh = bilinear_matrix(H, s)               # (H, S_PAD)
        Uw = bilinear_matrix(W, s)               # (W, S_PAD)
        Pk = np.kron(Ph, Pw)                     # (S2, H*W)
        Uk = np.kron(Uh, Uw)                     # (H*W, S2)
        # Padding-safety invariant: padded pooled cells are exactly zero and
        # their upsample columns are exactly zero (kills ReLU(bias) leakage).
        padded = (ii >= s) | (jj >= s)
        assert np.all(Pk[padded, :] == 0.0), "padded pooling rows must be zero"
        assert np.all(Uk[:, padded] == 0.0), "padded upsample cols must be zero"
        ph.append(Ph); pw.append(Pw); uh.append(Uh); uw.append(Uw)
        pkT_cols.append(np.ascontiguousarray(Pk.T))   # (H*W, S2)
        ukT_rows.append(np.ascontiguousarray(Uk.T))   # (S2, H*W)
    pkT_all = np.concatenate(pkT_cols, axis=1)        # (H*W, 4*S2) lane-stacked
    ukT_all = np.stack(ukT_rows)                      # (4, S2, H*W)
    st = lambda xs: jnp.asarray(np.stack(xs))
    return st(ph), st(pw), st(uh), st(uw), jnp.asarray(pkT_all), jnp.asarray(ukT_all)


def reference(x, ph, pw, uh, uw, wf, bf):
    """Pure-JAX reference with the same math, for a correctness check."""
    feats = [x]
    for k in range(N_BRANCH):
        pooled = jnp.einsum('ih,nchw,jw->ncij', ph[k], x, pw[k])
        y = jnp.einsum('oc,ncij->noij', wf[k], pooled) + bf[k][None, :, :, None]
        z = jnp.maximum(y, 0.0)
        up = jnp.einsum('hi,noij,wj->nohw', uh[k], z, uw[k])
        feats.append(up)
    return jnp.concatenate(feats, axis=1)


if __name__ == "__main__":
    N, C, H, W = 2, 4, 16, 16
    OC = C // 4

    key = jax.random.PRNGKey(0)
    kx, kw, kb = jax.random.split(key, 3)
    x = jax.random.normal(kx, (N, C, H, W), jnp.float32)

    # Deterministic synthetic parameters (Conv2d 1x1 + BatchNorm2d per branch).
    conv_w = 0.5 * jax.random.normal(kw, (N_BRANCH, OC, C), jnp.float32)
    conv_b = 0.1 * jax.random.normal(kb, (N_BRANCH, OC), jnp.float32)
    gamma = 1.0 + 0.1 * jnp.arange(N_BRANCH * OC, dtype=jnp.float32).reshape(N_BRANCH, OC)
    beta = 0.05 * jnp.arange(N_BRANCH * OC, dtype=jnp.float32).reshape(N_BRANCH, OC)
    run_mean = 0.01 * jnp.arange(N_BRANCH * OC, dtype=jnp.float32).reshape(N_BRANCH, OC)
    run_var = jnp.ones((N_BRANCH, OC), jnp.float32)
    eps = 1e-5

    # Fold BatchNorm (eval mode) into the 1x1 conv.
    scale = gamma / jnp.sqrt(run_var + eps)
    wf = scale[:, :, None] * conv_w                              # (4, OC, C)
    bf = (scale * (conv_b - run_mean) + beta)[:, :, None]        # (4, OC, 1)

    ph, pw, uh, uw, pkT_all, ukT_all = build_branch_matrices(H, W)
    ref = reference(x, ph, pw, uh, uw, wf, bf)

    # Exact (f32) path.
    out32 = jax.block_until_ready(
        pyramid_pooling(x, pkT_all, ukT_all, wf, bf, compute_dtype=jnp.float32))
    assert out32.shape == (N, C + N_BRANCH * OC, H, W)
    if not bool(jnp.allclose(out32, ref, atol=1e-4, rtol=1e-4)):
        raise RuntimeError("Pallas kernel (f32 compute) does not match reference")

    # bf16 compute path (production configuration; passthrough stays exact).
    out16 = jax.block_until_ready(
        pyramid_pooling(x, pkT_all, ukT_all, wf, bf, compute_dtype=jnp.bfloat16))
    if not bool(jnp.allclose(out16, ref, atol=1e-1, rtol=5e-2)):
        raise RuntimeError("Pallas kernel (bf16 compute) does not match reference")

    print("KERNEL_OK")
</pallas_src>

<mosaic_0001>
module attributes {stable_mosaic.version = 11 : i64} {
  func.func @pool_conv_kernel(%arg0: i32, %arg1: i32, %arg2: memref<1x4x256xf32, #tpu.memory_space<vmem>>, %arg3: memref<256x256xf32, #tpu.memory_space<vmem>>, %arg4: memref<4x1x4xf32, #tpu.memory_space<vmem>>, %arg5: memref<1x1x256xf32, #tpu.memory_space<vmem>>) attributes {dimension_semantics = [#tpu.dimension_semantics<parallel>, #tpu.dimension_semantics<arbitrary>], iteration_bounds = array<i64: 2, 1>, scalar_prefetch = 0 : i64, scratch_operands = 0 : i64, tpu.core_type = #tpu.core_type<tc>, window_params = [{transform_indices = @transform_0, window_bounds = array<i64: 1, 4, 256>}, {pipeline_mode = #tpu.pipeline_mode<synchronous>, transform_indices = @transform_1, window_bounds = array<i64: 256, 256>}, {transform_indices = @transform_2, window_bounds = array<i64: 4, 1, 4>}, {transform_indices = @transform_3, window_bounds = array<i64: 1, 1, 256>}]} {
    %c0_i32 = arith.constant 0 : i32
    %0 = arith.cmpi eq, %arg1, %c0_i32 : i32
    %1 = arith.extui %0 : i1 to i32
    %c0_i32_0 = arith.constant 0 : i32
    %2 = arith.cmpi ne, %1, %c0_i32_0 : i32
    scf.if %2 {
      %cst_24 = arith.constant 0.000000e+00 : f32
      %30 = vector.broadcast %cst_24 : f32 to vector<1x1x256xf32>
      %c0_25 = arith.constant 0 : index
      %c0_26 = arith.constant 0 : index
      %c0_27 = arith.constant 0 : index
      %31 = vector.load %arg5[%c0_25, %c0_26, %c0_27] : memref<1x1x256xf32, #tpu.memory_space<vmem>>, vector<1x1x256xf32>
      tpu.vector_store %arg5[%c0_25, %c0_26, %c0_27], %30 {strides = array<i32>} : memref<1x1x256xf32, #tpu.memory_space<vmem>>, vector<1x1x256xf32>,
    } else {
    }
    %c0 = arith.constant 0 : index
    %c0_1 = arith.constant 0 : index
    %c0_2 = arith.constant 0 : index
    %3 = vector.load %arg2[%c0, %c0_1, %c0_2] : memref<1x4x256xf32, #tpu.memory_space<vmem>>, vector<1x4x256xf32>
    %4 = vector.shape_cast %3 : vector<1x4x256xf32> to vector<4x256xf32>
    %c0_3 = arith.constant 0 : index
    %c0_4 = arith.constant 0 : index
    %5 = vector.load %arg3[%c0_3, %c0_4] : memref<256x256xf32, #tpu.memory_space<vmem>>, vector<256x256xf32>
    %cst = arith.constant dense<0.000000e+00> : vector<4x256xf32>
    %6 = tpu.matmul %4, %5, %cst {dimension_numbers = #tpu.dot_dimension_numbers<[1], [0], [0], [1], [0, 0, 1, 1], [], []>} : vector<4x256xf32>, vector<256x256xf32>, vector<4x256xf32> -> vector<4x256xf32>
    %7 = vector.extract_strided_slice %6 {offsets = [0, 0], sizes = [4, 64], strides = [1, 1]} : vector<4x256xf32> to vector<4x64xf32>
    %c0_5 = arith.constant 0 : index
    %c0_6 = arith.constant 0 : index
    %c0_7 = arith.constant 0 : index
    %8 = vector.load %arg4[%c0_5, %c0_6, %c0_7] : memref<4x1x4xf32, #tpu.memory_space<vmem>>, vector<1x1x4xf32>
    %9 = vector.shape_cast %8 : vector<1x1x4xf32> to vector<1x4xf32>
    %cst_8 = arith.constant dense<0.000000e+00> : vector<1x64xf32>
    %10 = tpu.matmul %9, %7, %cst_8 {dimension_numbers = #tpu.dot_dimension_numbers<[1], [0], [0], [1], [0, 0, 1, 1], [], []>} : vector<1x4xf32>, vector<4x64xf32>, vector<1x64xf32> -> vector<1x64xf32>
    %11 = vector.extract_strided_slice %6 {offsets = [0, 64], sizes = [4, 64], strides = [1, 1]} : vector<4x256xf32> to vector<4x64xf32>
    %c1 = arith.constant 1 : index
    %c0_9 = arith.constant 0 : index
    %c0_10 = arith.constant 0 : index
    %12 = vector.load %arg4[%c1, %c0_9, %c0_10] : memref<4x1x4xf32, #tpu.memory_space<vmem>>, vector<1x1x4xf32>
    %13 = vector.shape_cast %12 : vector<1x1x4xf32> to vector<1x4xf32>
    %cst_11 = arith.constant dense<0.000000e+00> : vector<1x64xf32>
    %14 = tpu.matmul %13, %11, %cst_11 {dimension_numbers = #tpu.dot_dimension_numbers<[1], [0], [0], [1], [0, 0, 1, 1], [], []>} : vector<1x4xf32>, vector<4x64xf32>, vector<1x64xf32> -> vector<1x64xf32>
    %15 = vector.extract_strided_slice %6 {offsets = [0, 128], sizes = [4, 64], strides = [1, 1]} : vector<4x256xf32> to vector<4x64xf32>
    %c2 = arith.constant 2 : index
    %c0_12 = arith.constant 0 : index
    %c0_13 = arith.constant 0 : index
    %16 = vector.load %arg4[%c2, %c0_12, %c0_13] : memref<4x1x4xf32, #tpu.memory_space<vmem>>, vector<1x1x4xf32>
    %17 = vector.shape_cast %16 : vector<1x1x4xf32> to vector<1x4xf32>
    %cst_14 = arith.constant dense<0.000000e+00> : vector<1x64xf32>
    %18 = tpu.matmul %17, %15, %cst_14 {dimension_numbers = #tpu.dot_dimension_numbers<[1], [0], [0], [1], [0, 0, 1, 1], [], []>} : vector<1x4xf32>, vector<4x64xf32>, vector<1x64xf32> -> vector<1x64xf32>
    %19 = vector.extract_strided_slice %6 {offsets = [0, 192], sizes = [4, 64], strides = [1, 1]} : vector<4x256xf32> to vector<4x64xf32>
    %c3 = arith.constant 3 : index
    %c0_15 = arith.constant 0 : index
    %c0_16 = arith.constant 0 : index
    %20 = vector.load %arg4[%c3, %c0_15, %c0_16] : memref<4x1x4xf32, #tpu.memory_space<vmem>>, vector<1x1x4xf32>
    %21 = vector.shape_cast %20 : vector<1x1x4xf32> to vector<1x4xf32>
    %cst_17 = arith.constant dense<0.000000e+00> : vector<1x64xf32>
    %22 = tpu.matmul %21, %19, %cst_17 {dimension_numbers = #tpu.dot_dimension_numbers<[1], [0], [0], [1], [0, 0, 1, 1], [], []>} : vector<1x4xf32>, vector<4x64xf32>, vector<1x64xf32> -> vector<1x64xf32>
    %c0_18 = arith.constant 0 : index
    %c0_19 = arith.constant 0 : index
    %c0_20 = arith.constant 0 : index
    %23 = vector.load %arg5[%c0_18, %c0_19, %c0_20] : memref<1x1x256xf32, #tpu.memory_space<vmem>>, vector<1x1x256xf32>
    %24 = vector.shape_cast %23 : vector<1x1x256xf32> to vector<1x256xf32>
    %25 = tpu.concatenate %10, %14, %18, %22 in 1 : vector<1x64xf32>, vector<1x64xf32>, vector<1x64xf32>, vector<1x64xf32> -> vector<1x256xf32>
    %26 = arith.addf %24, %25 : vector<1x256xf32>
    %c0_21 = arith.constant 0 : index
    %c0_22 = arith.constant 0 : index
    %c0_23 = arith.constant 0 : index
    %27 = vector.load %arg5[%c0_21, %c0_22, %c0_23] : memref<1x1x256xf32, #tpu.memory_space<vmem>>, vector<1x1x256xf32>
    %28 = vector.shape_cast %27 : vector<1x1x256xf32> to vector<1x256xf32>
    %29 = vector.shape_cast %26 : vector<1x256xf32> to vector<1x1x256xf32>
    tpu.vector_store %arg5[%c0_21, %c0_22, %c0_23], %29 {strides = array<i32>} : memref<1x1x256xf32, #tpu.memory_space<vmem>>, vector<1x1x256xf32>,
    return
  }
  func.func @transform_0(%arg0: i32, %arg1: i32) -> (i32, i32, i32) {
    %c0_i32 = arith.constant 0 : i32
    %c0_i32_0 = arith.constant 0 : i32
    return %arg0, %arg1, %c0_i32 : i32, i32, i32
  }
  func.func @transform_1(%arg0: i32, %arg1: i32) -> (i32, i32) {
    %c0_i32 = arith.constant 0 : i32
    %c0_i32_0 = arith.constant 0 : i32
    %c0_i32_1 = arith.constant 0 : i32
    return %c0_i32, %c0_i32_0 : i32, i32
  }
  func.func @transform_2(%arg0: i32, %arg1: i32) -> (i32, i32, i32) {
    %c0_i32 = arith.constant 0 : i32
    %c0_i32_0 = arith.constant 0 : i32
    %c0_i32_1 = arith.constant 0 : i32
    return %c0_i32, %c0_i32_0, %arg1 : i32, i32, i32
  }
  func.func @transform_3(%arg0: i32, %arg1: i32) -> (i32, i32, i32) {
    %c0_i32 = arith.constant 0 : i32
    %c0_i32_0 = arith.constant 0 : i32
    %c0_i32_1 = arith.constant 0 : i32
    return %arg0, %c0_i32, %c0_i32_0 : i32, i32, i32
  }
}

</mosaic_0001>

<llo_original>
// kernel: tpu_custom_call.1
$region0: #{tpu_custom_call.1}
  #allocation0 [shape = 'u32[]', space=smem, size = 0x4, offset = 0x4, fixed_abs, tag = 'smem constant byte address 0x4 - core index']
  #allocation1 [shape = 'u32[144,128]{1,0:T(1,128)}', space=vmem, size = 0x12000, scoped, tag = 'internal scratch']
  %s0 = inlined_call_operand.hbm [shape: f32[2,4,256], index: 0, kind: input, shape index: {}]
  %s1 = inlined_call_operand.hbm [shape: f32[256,256], index: 1, kind: input, shape index: {}]
  %s2 = inlined_call_operand.vmem [shape: f32[4,1,4], index: 2, kind: input, shape index: {}]
  %s3 = inlined_call_operand.hbm [shape: f32[2,1,256], index: 3, kind: output, shape index: {}]
  %s4 = sld [smem:[#allocation0]]
  $region57: #{tpu_custom_call.1} parent=0
    _
  %s6 = ssub.s32 1, %s4
  %s7 = scalar_select 0, %s6, %s4
  $region1: #{tpu_custom_call.1} parent=0
    #allocation2 [shape = 'u8[8192]{0}', space=vmem, size = 0x2000, scoped, tag = 'input window, operand 0']
    #allocation3 [shape = 's32[2]{0}', space=sflag, size = 0x8, scoped, tag = 'scoped memory for tpu_custom_call.1']
    #allocation4 [shape = 's32[2]{0}', space=sflag, size = 0x8, scoped, tag = 'scoped memory for tpu_custom_call.1']
    #allocation5 [shape = 'u8[262144]{0}', space=vmem, size = 0x40000, scoped, tag = 'input window, operand 1, single buffered']
    #allocation6 [shape = 's32[1]{0}', space=sflag, size = 0x4, scoped, tag = 'scoped memory for tpu_custom_call.1']
    #allocation7 [shape = 'u8[2048]{0}', space=vmem, size = 0x800, scoped, tag = 'output window, operand 0']
    %8 = vsyncpa [#allocation3], 0
    %s9 = scalar_lea.sflag [#allocation3], 1
    %10 = vsyncpa %s9, 0
    %11 = vsyncpa [#allocation6], 0
    %12 = vsyncpa [#allocation4], 0
    %s13 = scalar_lea.sflag [#allocation4], 1
    %14 = vsyncpa %s13, 0
    loop: start=0, step=1, limit=4
    $region2: #{tpu_custom_call.1} parent=1 // loop_pre_header
      _
    $region3: #{tpu_custom_call.1} parent=1 // loop_header
      %s16 = sphi 0, %s20
      %p17 = scmp.ge.s32.totalorder %s16, 4
      %s23 = sphi 0, %s35
      %s24 = sphi 0, %s31
      %s25 = sphi 0, %s23
      %s26 = sphi 0, %s24
      %s27 = sphi 0, %s25
      %s28 = sphi 0, %s26
      %s40 = sphi 0, %s42
      %s43 = sphi 0, %s40
      %s44 = sphi 0, %s43
      %s60 = sphi 0, %s44
      %s64 = sphi 0, %s64
      %s66 = sphi 0, %s64
      %s67 = sphi 0, %s66
      %s81 = sphi 0, %s67
      %s87 = sphi 0, %s89
      %s90 = sphi 0, %s87
      %s91 = sphi 0, %s90
      %s107 = sphi 0, %s91
      %s113 = sphi 0, %s115
      %s116 = sphi 0, %s113
      %s117 = sphi 0, %s116
      %s133 = sphi 0, %s117
    $region4: #{tpu_custom_call.1} parent=1 // loop_header_branch
      %19 = sbr.rel (%p17) target = $region8
    $region5: #{tpu_custom_call.1} parent=1 // loop_body
      %s21 = ssub.s32 %s16, 1
      %s22 = ssub.s32 %s16, 2
      %s29 = sadd.s32 1, %s24
      %p30 = scmp.ge.s32.totalorder %s29, 1
      %s31 = scalar_select %p30, 0, %s29
      %s32 = sadd.s32 1, %s23
      %s33 = scalar_select %p30, %s32, %s23
      %p34 = scmp.ge.s32.totalorder %s33, 2
      %s35 = scalar_select %p34, 0, %s33
      %s36 = ssub.s32 %s23, %s35
      %s37 = ssub.s32 %s24, %s31
      %s38 = sor.u32 %s36, %s37
      %p39 = scmp.eq.s32.totalorder %s38, 0
      %s41 = sadd.s32 %s40, 1
      %s42 = scalar_select %p39, %s40, %s41
      %p45 = pneg %p39
      %p46 = scmp.eq.s32.totalorder %s16, 1
      %p47 = por %p45, %p46
      %p48 = scmp.ne.s32.totalorder %s40, %s43
      %p49 = scmp.eq.s32.totalorder %s16, 0
      %p50 = por %p48, %p49
      %p51 = scmp.ne.s32.totalorder %s40, %s43
      %p52 = scmp.eq.s32.totalorder %s21, 1
      %p53 = por %p51, %p52
      %p54 = scmp.ne.s32.totalorder %s43, %s44
      %p55 = scmp.eq.s32.totalorder %s21, 0
      %p56 = por %p54, %p55
      %p57 = scmp.ne.s32.totalorder %s43, %s44
      %p58 = scmp.eq.s32.totalorder %s22, 1
      %p59 = por %p57, %p58
      %p61 = scmp.ne.s32.totalorder %s44, %s60
      %p62 = scmp.eq.s32.totalorder %s22, 0
      %p63 = por %p61, %p62
      %s65 = sadd.s32 %s64, 1
      %p68 = scmp.eq.s32.totalorder %s16, 1
      %p69 = scmp.ne.s32.totalorder %s64, %s66
      %p70 = scmp.eq.s32.totalorder %s16, 0
      %p71 = por %p69, %p70
      %p72 = scmp.ne.s32.totalorder %s64, %s66
      %p73 = scmp.eq.s32.totalorder %s21, 1
      %p74 = por %p72, %p73
      %p75 = scmp.ne.s32.totalorder %s66, %s67
      %p76 = scmp.eq.s32.totalorder %s21, 0
      %p77 = por %p75, %p76
      %p78 = scmp.ne.s32.totalorder %s66, %s67
      %p79 = scmp.eq.s32.totalorder %s22, 1
      %p80 = por %p78, %p79
      %p82 = scmp.ne.s32.totalorder %s67, %s81
      %p83 = scmp.eq.s32.totalorder %s22, 0
      %p84 = por %p82, %p83
      %s85 = ssub.s32 %s24, %s31
      %p86 = scmp.eq.s32.totalorder %s85, 0
      %s88 = sadd.s32 %s87, 1
      %s89 = scalar_select %p86, %s87, %s88
      %p92 = pneg %p86
      %p93 = scmp.eq.s32.totalorder %s16, 1
      %p94 = por %p92, %p93
      %p95 = scmp.ne.s32.totalorder %s87, %s90
      %p96 = scmp.eq.s32.totalorder %s16, 0
      %p97 = por %p95, %p96
      %p98 = scmp.ne.s32.totalorder %s87, %s90
      %p99 = scmp.eq.s32.totalorder %s21, 1
      %p100 = por %p98, %p99
      %p101 = scmp.ne.s32.totalorder %s90, %s91
      %p102 = scmp.eq.s32.totalorder %s21, 0
      %p103 = por %p101, %p102
      %p104 = scmp.ne.s32.totalorder %s90, %s91
      %p105 = scmp.eq.s32.totalorder %s22, 1
      %p106 = por %p104, %p105
      %p108 = scmp.ne.s32.totalorder %s91, %s107
      %p109 = scmp.eq.s32.totalorder %s22, 0
      %p110 = por %p108, %p109
      %s111 = ssub.s32 %s23, %s35
      %p112 = scmp.eq.s32.totalorder %s111, 0
      %s114 = sadd.s32 %s113, 1
      %s115 = scalar_select %p112, %s113, %s114
      %p118 = pneg %p112
      %p119 = scmp.eq.s32.totalorder %s16, 1
      %p120 = por %p118, %p119
      %p121 = scmp.ne.s32.totalorder %s113, %s116
      %p122 = scmp.eq.s32.totalorder %s16, 0
      %p123 = por %p121, %p122
      %p124 = scmp.ne.s32.totalorder %s113, %s116
      %p125 = scmp.eq.s32.totalorder %s21, 1
      %p126 = por %p124, %p125
      %p127 = scmp.ne.s32.totalorder %s116, %s117
      %p128 = scmp.eq.s32.totalorder %s21, 0
      %p129 = por %p127, %p128
      %p130 = scmp.ne.s32.totalorder %s116, %s117
      %p131 = scmp.eq.s32.totalorder %s22, 1
      %p132 = por %p130, %p131
      %p134 = scmp.ne.s32.totalorder %s117, %s133
      %p135 = scmp.eq.s32.totalorder %s22, 0
      %p136 = por %p134, %p135
      %p137 = scmp.le.s32.totalorder 1, %s16
      %p138 = scmp.lt.s32.totalorder %s16, 3
      %p139 = pnand %p137, %p138
      %p140 = pneg %p139
      // Predicated region
      $region9: #{tpu_custom_call.1} parent=5 // pred_check
        _
      $region10: #{tpu_custom_call.1} parent=5 // pred_check_branch
        %142 = sbr.rel (%p139) target = $region12
      $region11: #{tpu_custom_call.1} parent=5 // pred_region
        %s143 = ssub.s32 %s16, 1
        // Predicated region
        $region13: #{tpu_custom_call.1} parent=11 // pred_check
          %p144 = pneg %p77
        $region14: #{tpu_custom_call.1} parent=11 // pred_check_branch
          %146 = sbr.rel (%p144) target = $region16
        $region15: #{tpu_custom_call.1} parent=11 // pred_region
          %s148 = ssub.s32 8192, 8192
          %149 = vsyncadd [#allocation6], %s148
          %s150 = sshll.u32 [#allocation5], 4
          %s151 = int_to_ptr.vmem [resolvable:$true] %s150
          %156 = dma.hbm_to_vmem [thread:$0]  %s1, 8192, %s151, [#allocation6], 256, 256, 16
        $region16: #{tpu_custom_call.1} parent=11 // pred_fallthru
          _
        // Predicated region
        $region17: #{tpu_custom_call.1} parent=11 // pred_check
          %p157 = pneg %p103
        $region18: #{tpu_custom_call.1} parent=11 // pred_check_branch
          %159 = sbr.rel (%p157) target = $region20
        $region19: #{tpu_custom_call.1} parent=11 // pred_region
          %p160 = scmp.lt.s32.totalorder %s26, 0
          %s161 = scalar_select %p160, %s26, 0
          %s162 = scalar_lea.vmem %s2, %s161
        $region20: #{tpu_custom_call.1} parent=11 // pred_fallthru
          _
      $region12: #{tpu_custom_call.1} parent=5 // pred_fallthru
        _
      %p163 = scmp.lt.s32.totalorder %s16, 2
      // Predicated region
      $region21: #{tpu_custom_call.1} parent=5 // pred_check
        %p164 = pneg %p163
      $region22: #{tpu_custom_call.1} parent=5 // pred_check_branch
        %166 = sbr.rel (%p164) target = $region24
      $region23: #{tpu_custom_call.1} parent=5 // pred_region
        // Predicated region
        $region25: #{tpu_custom_call.1} parent=23 // pred_check
          %p167 = pneg %p50
        $region26: #{tpu_custom_call.1} parent=23 // pred_check_branch
          %169 = sbr.rel (%p167) target = $region28
        $region27: #{tpu_custom_call.1} parent=23 // pred_region
          %s170 = sand.u32 %s40, 1
          %s171 = scalar_lea.sflag [#allocation3], %s170
          %s172 = sand.u32 %s40, 1
          %s173 = smul.addr %s172, 8
          %s174 = scalar_lea.vmem [#allocation2], %s173
          %s176 = ssub.s32 128, 128
          %177 = vsyncadd %s171, %s176
          %s178 = smul.addr %s24, 2
          %s179 = smul.addr %s23, 2
          %s180 = sadd.s32 %s178, %s179
          %s181 = smul.addr %s180, 64
          %s182 = scalar_lea.hbm %s0, %s181
          %s184 = sshll.u32 %s174, 4
          %s185 = int_to_ptr.vmem [resolvable:$true] %s184
          %187 = dma.hbm_to_vmem [thread:$0]  %s182, 128, %s185, %s171
        $region28: #{tpu_custom_call.1} parent=23 // pred_fallthru
          _
      $region24: #{tpu_custom_call.1} parent=5 // pred_fallthru
        _
      %p188 = scmp.le.s32.totalorder 1, %s16
      %p189 = scmp.lt.s32.totalorder %s16, 3
      %p190 = pnand %p188, %p189
      %p191 = pneg %p190
      // Predicated region
      $region29: #{tpu_custom_call.1} parent=5 // pred_check
        _
      $region30: #{tpu_custom_call.1} parent=5 // pred_check_branch
        %193 = sbr.rel (%p190) target = $region32
      $region31: #{tpu_custom_call.1} parent=5 // pred_region
        %s194 = ssub.s32 %s16, 1
        %s195 = sand.u32 %s43, 1
        %s196 = scalar_lea.sflag [#allocation3], %s195
        %s197 = sand.u32 %s43, 1
        %s198 = smul.addr %s197, 8
        %s199 = scalar_lea.vmem [#allocation2], %s198
        // Predicated region
        $region33: #{tpu_custom_call.1} parent=31 // pred_check
          %p200 = pneg %p56
        $region34: #{tpu_custom_call.1} parent=31 // pred_check_branch
          %202 = sbr.rel (%p200) target = $region36
        $region35: #{tpu_custom_call.1} parent=31 // pred_region
          %203 = dma.done %s196, 128
        $region36: #{tpu_custom_call.1} parent=31 // pred_fallthru
          _
        // Predicated region
        $region37: #{tpu_custom_call.1} parent=31 // pred_check
          %p204 = pneg %p77
        $region38: #{tpu_custom_call.1} parent=31 // pred_check_branch
          %206 = sbr.rel (%p204) target = $region40
        $region39: #{tpu_custom_call.1} parent=31 // pred_region
          %207 = dma.done [#allocation6], 8192
        $region40: #{tpu_custom_call.1} parent=31 // pred_fallthru
          _
        %s208 = sand.u32 %s43, 1
        %s209 = scalar_lea.sflag [#allocation3], %s208
        %s210 = sand.u32 %s43, 1
        %s211 = smul.addr %s210, 8
        %s212 = scalar_lea.vmem [#allocation2], %s211
        %p213 = pneg %p56
        %p214 = pneg %p53
        %p215 = pneg %p77
        %p216 = pneg %p74
        %p217 = scmp.lt.s32.totalorder %s26, 0
        %s218 = scalar_select %p217, %s26, 0
        %s219 = scalar_lea.vmem %s2, %s218
        %p220 = pneg %p103
        %p221 = pneg %p100
        %p222 = pneg %p129
        %p223 = pneg %p126
        %s224 = sand.u32 %s116, 1
        %s225 = scalar_lea.sflag [#allocation4], %s224
        %s226 = sand.u32 %s116, 1
        %s227 = smul.addr %s226, 2
        %s228 = scalar_lea.vmem [#allocation7], %s227
        %p229 = scmp.lt.s32.totalorder %s26, 0
        %s230 = scalar_select %p229, %s26, 0
        %s231 = scalar_lea.vmem %s2, %s230
        %p232 = scmp.eq.s32.totalorder %s26, 0
        // Predicated region
        $region41: #{tpu_custom_call.1} parent=31 // pred_check
          %p233 = pneg %p232
        $region42: #{tpu_custom_call.1} parent=31 // pred_check_branch
          %235 = sbr.rel (%p233) target = $region44
        $region43: #{tpu_custom_call.1} parent=31 // pred_region
          %v236 = vlaneseq
          %vm237 = vcmp.ge.s32.totalorder %v236, 0
          %vm238 = vcmp.lt.s32.totalorder %v236, 256
          %vm239 = vmand %vm237, %vm238
          %240 = vst.msk [vmem:[%s228] sm:$0x3] %vm239, 0.0
        $region44: #{tpu_custom_call.1} parent=31 // pred_fallthru
          _
        %v241 = vld [vmem:[%s199] sm:$0xff]
        %v242 = vld [vmem:[#allocation5] sm:$0xff]
        %v243 = vld [vmem:[#allocation5 + $0x8] sm:$0xff]
        %v244 = vld [vmem:[#allocation5 + $0x10] sm:$0xff]
        %v245 = vld [vmem:[#allocation5 + $0x18] sm:$0xff]
        %v246 = vld [vmem:[#allocation5 + $0x20] sm:$0xff]
        %v247 = vld [vmem:[#allocation5 + $0x28] sm:$0xff]
        %v248 = vld [vmem:[#allocation5 + $0x30] sm:$0xff]
        %v249 = vld [vmem:[#allocation5 + $0x38] sm:$0xff]
        %v250 = vld [vmem:[#allocation5 + $0x40] sm:$0xff]
        %v251 = vld [vmem:[#allocation5 + $0x48] sm:$0xff]
        %v252 = vld [vmem:[#allocation5 + $0x50] sm:$0xff]
        %v253 = vld [vmem:[#allocation5 + $0x58] sm:$0xff]
        %v254 = vld [vmem:[#allocation5 + $0x60] sm:$0xff]
        %v255 = vld [vmem:[#allocation5 + $0x68] sm:$0xff]
        %v256 = vld [vmem:[#allocation5 + $0x70] sm:$0xff]
        %v257 = vld [vmem:[#allocation5 + $0x78] sm:$0xff]
        %v258 = vld [vmem:[#allocation5 + $0x80] sm:$0xff]
        %v259 = vld [vmem:[#allocation5 + $0x88] sm:$0xff]
        %v260 = vld [vmem:[#allocation5 + $0x90] sm:$0xff]
        %v261 = vld [vmem:[#allocation5 + $0x98] sm:$0xff]
        %v262 = vld [vmem:[#allocation5 + $0xa0] sm:$0xff]
        %v263 = vld [vmem:[#allocation5 + $0xa8] sm:$0xff]
        %v264 = vld [vmem:[#allocation5 + $0xb0] sm:$0xff]
        %v265 = vld [vmem:[#allocation5 + $0xb8] sm:$0xff]
        %v266 = vld [vmem:[#allocation5 + $0xc0] sm:$0xff]
        %v267 = vld [vmem:[#allocation5 + $0xc8] sm:$0xff]
        %v268 = vld [vmem:[#allocation5 + $0xd0] sm:$0xff]
        %v269 = vld [vmem:[#allocation5 + $0xd8] sm:$0xff]
        %v270 = vld [vmem:[#allocation5 + $0xe0] sm:$0xff]
        %v271 = vld [vmem:[#allocation5 + $0xe8] sm:$0xff]
        %v272 = vld [vmem:[#allocation5 + $0xf0] sm:$0xff]
        %v273 = vld [vmem:[#allocation5 + $0xf8] sm:$0xff]
        %v274 = vld [vmem:[#allocation5 + $0x100] sm:$0xff]
        %v275 = vld [vmem:[#allocation5 + $0x108] sm:$0xff]
        %v276 = vld [vmem:[#allocation5 + $0x110] sm:$0xff]
        %v277 = vld [vmem:[#allocation5 + $0x118] sm:$0xff]
        %v278 = vld [vmem:[#allocation5 + $0x120] sm:$0xff]
        %v279 = vld [vmem:[#allocation5 + $0x128] sm:$0xff]
        %v280 = vld [vmem:[#allocation5 + $0x130] sm:$0xff]
        %v281 = vld [vmem:[#allocation5 + $0x138] sm:$0xff]
        %v282 = vld [vmem:[#allocation5 + $0x140] sm:$0xff]
        %v283 = vld [vmem:[#allocation5 + $0x148] sm:$0xff]
        %v284 = vld [vmem:[#allocation5 + $0x150] sm:$0xff]
        %v285 = vld [vmem:[#allocation5 + $0x158] sm:$0xff]
        %v286 = vld [vmem:[#allocation5 + $0x160] sm:$0xff]
        %v287 = vld [vmem:[#allocation5 + $0x168] sm:$0xff]
        %v288 = vld [vmem:[#allocation5 + $0x170] sm:$0xff]
        %v289 = vld [vmem:[#allocation5 + $0x178] sm:$0xff]
        %v290 = vld [vmem:[#allocation5 + $0x180] sm:$0xff]
        %v291 = vld [vmem:[#allocation5 + $0x188] sm:$0xff]
        %v292 = vld [vmem:[#allocation5 + $0x190] sm:$0xff]
        %v293 = vld [vmem:[#allocation5 + $0x198] sm:$0xff]
        %v294 = vld [vmem:[#allocation5 + $0x1a0] sm:$0xff]
        %v295 = vld [vmem:[#allocation5 + $0x1a8] sm:$0xff]
        %v296 = vld [vmem:[#allocation5 + $0x1b0] sm:$0xff]
        %v297 = vld [vmem:[#allocation5 + $0x1b8] sm:$0xff]
        %v298 = vld [vmem:[#allocation5 + $0x1c0] sm:$0xff]
        %v299 = vld [vmem:[#allocation5 + $0x1c8] sm:$0xff]
        %v300 = vld [vmem:[#allocation5 + $0x1d0] sm:$0xff]
        %v301 = vld [vmem:[#allocation5 + $0x1d8] sm:$0xff]
        %v302 = vld [vmem:[#allocation5 + $0x1e0] sm:$0xff]
        %v303 = vld [vmem:[#allocation5 + $0x1e8] sm:$0xff]
        %v304 = vld [vmem:[#allocation5 + $0x1f0] sm:$0xff]
        %v305 = vld [vmem:[#allocation5 + $0x1f8] sm:$0xff]
        %v307 = vcombine.high %v241, %v241
        %309 = vmatprep.subr.mxu0 %v243
        %310 = vmatpush1.msra.mxu0 %v242
        %311 = vmatprep.subr.mxu0 %v245
        %312 = vmatpush1.msra.mxu0 %v244
        %313 = vmatprep.subr.mxu0 %v247
        %314 = vmatpush1.msra.mxu0 %v246
        %315 = vmatprep.subr.mxu0 %v249
        %316 = vmatpush1.msra.mxu0 %v248
        %317 = vmatprep.subr.mxu0 %v251
        %318 = vmatpush1.msra.mxu0 %v250
        %319 = vmatprep.subr.mxu0 %v253
        %320 = vmatpush1.msra.mxu0 %v252
        %321 = vmatprep.subr.mxu0 %v255
        %322 = vmatpush1.msra.mxu0 %v254
        %323 = vmatprep.subr.mxu0 %v257
        %324 = vmatpush1.msra.mxu0 %v256
        %325 = vmatprep.subr.mxu0 %v259
        %326 = vmatpush1.msra.mxu0 %v258
        %327 = vmatprep.subr.mxu0 %v261
        %328 = vmatpush1.msra.mxu0 %v260
        %329 = vmatprep.subr.mxu0 %v263
        %330 = vmatpush1.msra.mxu0 %v262
        %331 = vmatprep.subr.mxu0 %v265
        %332 = vmatpush1.msra.mxu0 %v264
        %333 = vmatprep.subr.mxu0 %v267
        %334 = vmatpush1.msra.mxu0 %v266
        %335 = vmatprep.subr.mxu0 %v269
        %336 = vmatpush1.msra.mxu0 %v268
        %337 = vmatprep.subr.mxu0 %v271
        %338 = vmatpush1.msra.mxu0 %v270
        %339 = vmatprep.subr.mxu0 %v273
        %340 = vmatpush1.msra.mxu0 %v272
        %341 = vmatprep.subr.mxu0 %v275
        %342 = vmatpush1.msra.mxu0 %v274
        %343 = vmatprep.subr.mxu0 %v277
        %344 = vmatpush1.msra.mxu0 %v276
        %345 = vmatprep.subr.mxu0 %v279
        %346 = vmatpush1.msra.mxu0 %v278
        %347 = vmatprep.subr.mxu0 %v281
        %348 = vmatpush1.msra.mxu0 %v280
        %349 = vmatprep.subr.mxu0 %v283
        %350 = vmatpush1.msra.mxu0 %v282
        %351 = vmatprep.subr.mxu0 %v285
        %352 = vmatpush1.msra.mxu0 %v284
        %353 = vmatprep.subr.mxu0 %v287
        %354 = vmatpush1.msra.mxu0 %v286
        %355 = vmatprep.subr.mxu0 %v289
        %356 = vmatpush1.msra.mxu0 %v288
        %357 = vmatprep.subr.mxu0 %v291
        %358 = vmatpush1.msra.mxu0 %v290
        %359 = vmatprep.subr.mxu0 %v293
        %360 = vmatpush1.msra.mxu0 %v292
        %361 = vmatprep.subr.mxu0 %v295
        %362 = vmatpush1.msra.mxu0 %v294
        %363 = vmatprep.subr.mxu0 %v297
        %364 = vmatpush1.msra.mxu0 %v296
        %365 = vmatprep.subr.mxu0 %v299
        %366 = vmatpush1.msra.mxu0 %v298
        %367 = vmatprep.subr.mxu0 %v301
        %368 = vmatpush1.msra.mxu0 %v300
        %369 = vmatprep.subr.mxu0 %v303
        %370 = vmatpush1.msra.mxu0 %v302
        %371 = vmatprep.subr.mxu0 %v305
        %372 = vmatpush1.msra.mxu0 %v304
        %373 = vmatprep.mubr.f32.mxu0 %v307
        %374 = vmatmul.mubr.f32.gmra.mrb[0].mxu0 %v241
        %v375 = vpop.f32.mrb[0].mxu0
        %v376 = vadd.f32 0.0, %v375
        %v377 = vpop.f32.mrb[0].mxu0
        %v378 = vadd.f32 0.0, %v377
        %379 = vdwg.mxu0
        %v380 = vld [vmem:[%s231] sm:$0x1]
        %vm381 = vcmask 31744
        %v383 = vsel %vm381, %v380, 0
        %vm385 = vcmask 1043456
        %v387 = vsel %vm385, %v376, 0
        %389 = vmatprep.subr.mxu0 0.0
        %390 = vmatpush1.msra.mxu0 %v387
        %391 = vmatprep.subr.mxu0 0.0
        %392 = vmatpush1.msra.mxu0 0.0
        %393 = vmatprep.subr.mxu0 0.0
        %394 = vmatpush1.msra.mxu0 0.0
        %395 = vmatprep.subr.mxu0 0.0
        %396 = vmatpush1.msra.mxu0 0.0
        %397 = vmatprep.subr.mxu0 0.0
        %398 = vmatpush1.msra.mxu0 0.0
        %399 = vmatprep.subr.mxu0 0.0
        %400 = vmatpush1.msra.mxu0 0.0
        %401 = vmatprep.subr.mxu0 0.0
        %402 = vmatpush1.msra.mxu0 0.0
        %403 = vmatprep.subr.mxu0 0.0
        %404 = vmatpush1.msra.mxu0 0.0
        %405 = vmatprep.subr.mxu0 0.0
        %406 = vmatpush1.msra.mxu0 0.0
        %407 = vmatprep.subr.mxu0 0.0
        %408 = vmatpush1.msra.mxu0 0.0
        %409 = vmatprep.subr.mxu0 0.0
        %410 = vmatpush1.msra.mxu0 0.0
        %411 = vmatprep.subr.mxu0 0.0
        %412 = vmatpush1.msra.mxu0 0.0
        %413 = vmatprep.subr.mxu0 0.0
        %414 = vmatpush1.msra.mxu0 0.0
        %415 = vmatprep.subr.mxu0 0.0
        %416 = vmatpush1.msra.mxu0 0.0
        %417 = vmatprep.subr.mxu0 0.0
        %418 = vmatpush1.msra.mxu0 0.0
        %419 = vmatprep.subr.mxu0 0.0
        %420 = vmatpush1.msra.mxu0 0.0
        %421 = vmatprep.subr.mxu0 0.0
        %422 = vmatpush1.msra.mxu0 0.0
        %423 = vmatprep.subr.mxu0 0.0
        %424 = vmatpush1.msra.mxu0 0.0
        %425 = vmatprep.subr.mxu0 0.0
        %426 = vmatpush1.msra.mxu0 0.0
        %427 = vmatprep.subr.mxu0 0.0
        %428 = vmatpush1.msra.mxu0 0.0
        %429 = vmatprep.subr.mxu0 0.0
        %430 = vmatpush1.msra.mxu0 0.0
        %431 = vmatprep.subr.mxu0 0.0
        %432 = vmatpush1.msra.mxu0 0.0
        %433 = vmatprep.subr.mxu0 0.0
        %434 = vmatpush1.msra.mxu0 0.0
        %435 = vmatprep.subr.mxu0 0.0
        %436 = vmatpush1.msra.mxu0 0.0
        %437 = vmatprep.subr.mxu0 0.0
        %438 = vmatpush1.msra.mxu0 0.0
        %439 = vmatprep.subr.mxu0 0.0
        %440 = vmatpush1.msra.mxu0 0.0
        %441 = vmatprep.subr.mxu0 0.0
        %442 = vmatpush1.msra.mxu0 0.0
        %443 = vmatprep.subr.mxu0 0.0
        %444 = vmatpush1.msra.mxu0 0.0
        %445 = vmatprep.subr.mxu0 0.0
        %446 = vmatpush1.msra.mxu0 0.0
        %447 = vmatprep.subr.mxu0 0.0
        %448 = vmatpush1.msra.mxu0 0.0
        %449 = vmatprep.subr.mxu0 0.0
        %450 = vmatpush1.msra.mxu0 0.0
        %451 = vmatprep.subr.mxu0 0.0
        %452 = vmatpush1.msra.mxu0 0.0
        %453 = vmatprep.mubr.f32.mxu0 0.0
        %454 = vmatmul.mubr.f32.gmra.mrb[0].mxu0 %v383
        %v455 = vpop.f32.mrb[0].mxu0
        %v456 = vadd.f32 0.0, %v455
        %v457 = vpop.f32.mrb[0].mxu0
        %458 = vdwg.mxu0
        %s459 = scalar_lea.vmem %s231, 1
        %v460 = vld [vmem:[%s459] sm:$0x1]
        %461 = vrot.lane.b32.xlu0 %v376, 64
        %v462 = vpop.permute.xlu0 %461
        %v464 = vsel %vm381, %v460, 0
        %v466 = vsel %vm385, %v462, 0
        %468 = vmatprep.subr.mxu0 0.0
        %469 = vmatpush1.msra.mxu0 %v466
        %470 = vmatprep.subr.mxu0 0.0
        %471 = vmatpush1.msra.mxu0 0.0
        %472 = vmatprep.subr.mxu0 0.0
        %473 = vmatpush1.msra.mxu0 0.0
        %474 = vmatprep.subr.mxu0 0.0
        %475 = vmatpush1.msra.mxu0 0.0
        %476 = vmatprep.subr.mxu0 0.0
        %477 = vmatpush1.msra.mxu0 0.0
        %478 = vmatprep.subr.mxu0 0.0
        %479 = vmatpush1.msra.mxu0 0.0
        %480 = vmatprep.subr.mxu0 0.0
        %481 = vmatpush1.msra.mxu0 0.0
        %482 = vmatprep.subr.mxu0 0.0
        %483 = vmatpush1.msra.mxu0 0.0
        %484 = vmatprep.subr.mxu0 0.0
        %485 = vmatpush1.msra.mxu0 0.0
        %486 = vmatprep.subr.mxu0 0.0
        %487 = vmatpush1.msra.mxu0 0.0
        %488 = vmatprep.subr.mxu0 0.0
        %489 = vmatpush1.msra.mxu0 0.0
        %490 = vmatprep.subr.mxu0 0.0
        %491 = vmatpush1.msra.mxu0 0.0
        %492 = vmatprep.subr.mxu0 0.0
        %493 = vmatpush1.msra.mxu0 0.0
        %494 = vmatprep.subr.mxu0 0.0
        %495 = vmatpush1.msra.mxu0 0.0
        %496 = vmatprep.subr.mxu0 0.0
        %497 = vmatpush1.msra.mxu0 0.0
        %498 = vmatprep.subr.mxu0 0.0
        %499 = vmatpush1.msra.mxu0 0.0
        %500 = vmatprep.subr.mxu0 0.0
        %501 = vmatpush1.msra.mxu0 0.0
        %502 = vmatprep.subr.mxu0 0.0
        %503 = vmatpush1.msra.mxu0 0.0
        %504 = vmatprep.subr.mxu0 0.0
        %505 = vmatpush1.msra.mxu0 0.0
        %506 = vmatprep.subr.mxu0 0.0
        %507 = vmatpush1.msra.mxu0 0.0
        %508 = vmatprep.subr.mxu0 0.0
        %509 = vmatpush1.msra.mxu0 0.0
        %510 = vmatprep.subr.mxu0 0.0
        %511 = vmatpush1.msra.mxu0 0.0
        %512 = vmatprep.subr.mxu0 0.0
        %513 = vmatpush1.msra.mxu0 0.0
        %514 = vmatprep.subr.mxu0 0.0
        %515 = vmatpush1.msra.mxu0 0.0
        %516 = vmatprep.subr.mxu0 0.0
        %517 = vmatpush1.msra.mxu0 0.0
        %518 = vmatprep.subr.mxu0 0.0
        %519 = vmatpush1.msra.mxu0 0.0
        %520 = vmatprep.subr.mxu0 0.0
        %521 = vmatpush1.msra.mxu0 0.0
        %522 = vmatprep.subr.mxu0 0.0
        %523 = vmatpush1.msra.mxu0 0.0
        %524 = vmatprep.subr.mxu0 0.0
        %525 = vmatpush1.msra.mxu0 0.0
        %526 = vmatprep.subr.mxu0 0.0
        %527 = vmatpush1.msra.mxu0 0.0
        %528 = vmatprep.subr.mxu0 0.0
        %529 = vmatpush1.msra.mxu0 0.0
        %530 = vmatprep.subr.mxu0 0.0
        %531 = vmatpush1.msra.mxu0 0.0
        %532 = vmatprep.mubr.f32.mxu0 0.0
        %533 = vmatmul.mubr.f32.gmra.mrb[0].mxu0 %v464
        %v534 = vpop.f32.mrb[0].mxu0
        %v535 = vadd.f32 0.0, %v534
        %v536 = vpop.f32.mrb[0].mxu0
        %537 = vdwg.mxu0
        %s538 = scalar_lea.vmem %s231, 2
        %v539 = vld [vmem:[%s538] sm:$0x1]
        %v541 = vsel %vm381, %v539, 0
        %v544 = vsel %vm385, %v378, 0
        %546 = vmatprep.subr.mxu0 0.0
        %547 = vmatpush1.msra.mxu0 %v544
        %548 = vmatprep.subr.mxu0 0.0
        %549 = vmatpush1.msra.mxu0 0.0
        %550 = vmatprep.subr.mxu0 0.0
        %551 = vmatpush1.msra.mxu0 0.0
        %552 = vmatprep.subr.mxu0 0.0
        %553 = vmatpush1.msra.mxu0 0.0
        %554 = vmatprep.subr.mxu0 0.0
        %555 = vmatpush1.msra.mxu0 0.0
        %556 = vmatprep.subr.mxu0 0.0
        %557 = vmatpush1.msra.mxu0 0.0
        %558 = vmatprep.subr.mxu0 0.0
        %559 = vmatpush1.msra.mxu0 0.0
        %560 = vmatprep.subr.mxu0 0.0
        %561 = vmatpush1.msra.mxu0 0.0
        %562 = vmatprep.subr.mxu0 0.0
        %563 = vmatpush1.msra.mxu0 0.0
        %564 = vmatprep.subr.mxu0 0.0
        %565 = vmatpush1.msra.mxu0 0.0
        %566 = vmatprep.subr.mxu0 0.0
        %567 = vmatpush1.msra.mxu0 0.0
        %568 = vmatprep.subr.mxu0 0.0
        %569 = vmatpush1.msra.mxu0 0.0
        %570 = vmatprep.subr.mxu0 0.0
        %571 = vmatpush1.msra.mxu0 0.0
        %572 = vmatprep.subr.mxu0 0.0
        %573 = vmatpush1.msra.mxu0 0.0
        %574 = vmatprep.subr.mxu0 0.0
        %575 = vmatpush1.msra.mxu0 0.0
        %576 = vmatprep.subr.mxu0 0.0
        %577 = vmatpush1.msra.mxu0 0.0
        %578 = vmatprep.subr.mxu0 0.0
        %579 = vmatpush1.msra.mxu0 0.0
        %580 = vmatprep.subr.mxu0 0.0
        %581 = vmatpush1.msra.mxu0 0.0
        %582 = vmatprep.subr.mxu0 0.0
        %583 = vmatpush1.msra.mxu0 0.0
        %584 = vmatprep.subr.mxu0 0.0
        %585 = vmatpush1.msra.mxu0 0.0
        %586 = vmatprep.subr.mxu0 0.0
        %587 = vmatpush1.msra.mxu0 0.0
        %588 = vmatprep.subr.mxu0 0.0
        %589 = vmatpush1.msra.mxu0 0.0
        %590 = vmatprep.subr.mxu0 0.0
        %591 = vmatpush1.msra.mxu0 0.0
        %592 = vmatprep.subr.mxu0 0.0
        %593 = vmatpush1.msra.mxu0 0.0
        %594 = vmatprep.subr.mxu0 0.0
        %595 = vmatpush1.msra.mxu0 0.0
        %596 = vmatprep.subr.mxu0 0.0
        %597 = vmatpush1.msra.mxu0 0.0
        %598 = vmatprep.subr.mxu0 0.0
        %599 = vmatpush1.msra.mxu0 0.0
        %600 = vmatprep.subr.mxu0 0.0
        %601 = vmatpush1.msra.mxu0 0.0
        %602 = vmatprep.subr.mxu0 0.0
        %603 = vmatpush1.msra.mxu0 0.0
        %604 = vmatprep.subr.mxu0 0.0
        %605 = vmatpush1.msra.mxu0 0.0
        %606 = vmatprep.subr.mxu0 0.0
        %607 = vmatpush1.msra.mxu0 0.0
        %608 = vmatprep.subr.mxu0 0.0
        %609 = vmatpush1.msra.mxu0 0.0
        %610 = vmatprep.mubr.f32.mxu0 0.0
        %611 = vmatmul.mubr.f32.gmra.mrb[0].mxu0 %v541
        %v612 = vpop.f32.mrb[0].mxu0
        %v613 = vadd.f32 0.0, %v612
        %v614 = vpop.f32.mrb[0].mxu0
        %615 = vdwg.mxu0
        %s616 = scalar_lea.vmem %s231, 3
        %v617 = vld [vmem:[%s616] sm:$0x1]
        %618 = vrot.lane.b32.xlu0 %v378, 64
        %v619 = vpop.permute.xlu0 %618
        %v621 = vsel %vm381, %v617, 0
        %v623 = vsel %vm385, %v619, 0
        %625 = vmatprep.subr.mxu0 0.0
        %626 = vmatpush1.msra.mxu0 %v623
        %627 = vmatprep.subr.mxu0 0.0
        %628 = vmatpush1.msra.mxu0 0.0
        %629 = vmatprep.subr.mxu0 0.0
        %630 = vmatpush1.msra.mxu0 0.0
        %631 = vmatprep.subr.mxu0 0.0
        %632 = vmatpush1.msra.mxu0 0.0
        %633 = vmatprep.subr.mxu0 0.0
        %634 = vmatpush1.msra.mxu0 0.0
        %635 = vmatprep.subr.mxu0 0.0
        %636 = vmatpush1.msra.mxu0 0.0
        %637 = vmatprep.subr.mxu0 0.0
        %638 = vmatpush1.msra.mxu0 0.0
        %639 = vmatprep.subr.mxu0 0.0
        %640 = vmatpush1.msra.mxu0 0.0
        %641 = vmatprep.subr.mxu0 0.0
        %642 = vmatpush1.msra.mxu0 0.0
        %643 = vmatprep.subr.mxu0 0.0
        %644 = vmatpush1.msra.mxu0 0.0
        %645 = vmatprep.subr.mxu0 0.0
        %646 = vmatpush1.msra.mxu0 0.0
        %647 = vmatprep.subr.mxu0 0.0
        %648 = vmatpush1.msra.mxu0 0.0
        %649 = vmatprep.subr.mxu0 0.0
        %650 = vmatpush1.msra.mxu0 0.0
        %651 = vmatprep.subr.mxu0 0.0
        %652 = vmatpush1.msra.mxu0 0.0
        %653 = vmatprep.subr.mxu0 0.0
        %654 = vmatpush1.msra.mxu0 0.0
        %655 = vmatprep.subr.mxu0 0.0
        %656 = vmatpush1.msra.mxu0 0.0
        %657 = vmatprep.subr.mxu0 0.0
        %658 = vmatpush1.msra.mxu0 0.0
        %659 = vmatprep.subr.mxu0 0.0
        %660 = vmatpush1.msra.mxu0 0.0
        %661 = vmatprep.subr.mxu0 0.0
        %662 = vmatpush1.msra.mxu0 0.0
        %663 = vmatprep.subr.mxu0 0.0
        %664 = vmatpush1.msra.mxu0 0.0
        %665 = vmatprep.subr.mxu0 0.0
        %666 = vmatpush1.msra.mxu0 0.0
        %667 = vmatprep.subr.mxu0 0.0
        %668 = vmatpush1.msra.mxu0 0.0
        %669 = vmatprep.subr.mxu0 0.0
        %670 = vmatpush1.msra.mxu0 0.0
        %671 = vmatprep.subr.mxu0 0.0
        %672 = vmatpush1.msra.mxu0 0.0
        %673 = vmatprep.subr.mxu0 0.0
        %674 = vmatpush1.msra.mxu0 0.0
        %675 = vmatprep.subr.mxu0 0.0
        %676 = vmatpush1.msra.mxu0 0.0
        %677 = vmatprep.subr.mxu0 0.0
        %678 = vmatpush1.msra.mxu0 0.0
        %679 = vmatprep.subr.mxu0 0.0
        %680 = vmatpush1.msra.mxu0 0.0
        %681 = vmatprep.subr.mxu0 0.0
        %682 = vmatpush1.msra.mxu0 0.0
        %683 = vmatprep.subr.mxu0 0.0
        %684 = vmatpush1.msra.mxu0 0.0
        %685 = vmatprep.subr.mxu0 0.0
        %686 = vmatpush1.msra.mxu0 0.0
        %687 = vmatprep.subr.mxu0 0.0
        %688 = vmatpush1.msra.mxu0 0.0
        %689 = vmatprep.mubr.f32.mxu0 0.0
        %690 = vmatmul.mubr.f32.gmra.mrb[0].mxu0 %v621
        %v691 = vpop.f32.mrb[0].mxu0
        %v692 = vadd.f32 0.0, %v691
        %v693 = vpop.f32.mrb[0].mxu0
        %694 = vdwg.mxu0
        %v695 = vld [vmem:[%s228] sm:$0x3]
        %697 = vrot.lane.b32.xlu0 %v535, 64
        %v698 = vpop.permute.xlu0 %697
        %701 = vrot.lane.b32.xlu0 %v692, 64
        %v702 = vpop.permute.xlu0 %701
        %vm704 = vcmask 523264
        %v705 = vsel %vm704, %v456, %v698
        %v706 = vsel %vm704, %v613, %v702
        %v709 = vcombine.low %v705, %v706
        %v711 = vunpack.c.l.s4 1966171168
        %v712 = vunpack.c.0.s8 %v711
        %v713 = vlaneseq
        %v714 = vshrl.u32 %v713, 7
        %v715 = vsub.s32 %v712, %v714
        %v716 = vrot.slane %v709, %v715
        %v718 = vunpack.c.l.s4 1966171168
        %v719 = vunpack.c.0.s8 %v718
        %v720 = vlaneseq
        %v721 = vshrl.u32 %v720, 7
        %v722 = vsub.s32 %v719, %v721
        %v723 = vrot.slane %v716, %v722
        %v725 = vadd.f32 %v695, %v723
        %v726 = vlaneseq
        %vm727 = vcmp.ge.s32.totalorder %v726, 0
        %vm728 = vcmp.lt.s32.totalorder %v726, 256
        %vm729 = vmand %vm727, %vm728
        %730 = vst.msk [vmem:[%s228] sm:$0x3] %vm729, %v725
        %s731 = sand.u32 %s116, 1
        %s732 = scalar_lea.sflag [#allocation4], %s731
        %s733 = sand.u32 %s116, 1
        %s734 = smul.addr %s733, 2
        %s735 = scalar_lea.vmem [#allocation7], %s734
        // Predicated region
        $region45: #{tpu_custom_call.1} parent=31 // pred_check
          %p736 = pneg %p126
        $region46: #{tpu_custom_call.1} parent=31 // pred_check_branch
          %738 = sbr.rel (%p736) target = $region48
        $region47: #{tpu_custom_call.1} parent=31 // pred_region
          %s740 = ssub.s32 32, 32
          %741 = vsyncadd %s732, %s740
          %s742 = smul.addr %s25, 2
          %s743 = smul.addr %s742, 16
          %s744 = scalar_lea.hbm %s3, %s743
          %s746 = sshll.u32 %s735, 4
          %s747 = int_to_ptr.vmem [resolvable:$true] %s746
          %749 = dma.vmem_to_hbm [thread:$0]  %s747, 32, %s744, %s732
        $region48: #{tpu_custom_call.1} parent=31 // pred_fallthru
          _
      $region32: #{tpu_custom_call.1} parent=5 // pred_fallthru
        _
      %p750 = scmp.le.s32.totalorder 2, %s16
      // Predicated region
      $region49: #{tpu_custom_call.1} parent=5 // pred_check
        %p751 = pneg %p750
      $region50: #{tpu_custom_call.1} parent=5 // pred_check_branch
        %753 = sbr.rel (%p751) target = $region52
      $region51: #{tpu_custom_call.1} parent=5 // pred_region
        %s754 = ssub.s32 %s16, 2
        // Predicated region
        $region53: #{tpu_custom_call.1} parent=51 // pred_check
          %p755 = pneg %p132
        $region54: #{tpu_custom_call.1} parent=51 // pred_check_branch
          %757 = sbr.rel (%p755) target = $region56
        $region55: #{tpu_custom_call.1} parent=51 // pred_region
          %s758 = sand.u32 %s117, 1
          %s759 = scalar_lea.sflag [#allocation4], %s758
          %s760 = sand.u32 %s117, 1
          %s761 = smul.addr %s760, 2
          %s762 = scalar_lea.vmem [#allocation7], %s761
          %763 = dma.done %s759, 32
        $region56: #{tpu_custom_call.1} parent=51 // pred_fallthru
          _
      $region52: #{tpu_custom_call.1} parent=5 // pred_fallthru
        _
    $region6: #{tpu_custom_call.1} parent=1 // loop_footer
      %s20 = sadd.s32 1, %s16
    $region7: #{tpu_custom_call.1} parent=1 // loop_footer_branch
      %15 = sbr.rel target = $region3
    $region8: #{tpu_custom_call.1} parent=1 // loop_exit
      _
    %764 = vsyncpa [#allocation3], 1
    %s765 = scalar_lea.sflag [#allocation3], 1
    %766 = vsyncpa %s765, 1
    %767 = vsyncpa [#allocation6], 1
    %768 = vsyncpa [#allocation4], 1
    %s769 = scalar_lea.sflag [#allocation4], 1
    %770 = vsyncpa %s769, 1

</llo_original>
